<compile_context>
chip_gen: v7x
topology: tpu7x:2x2x1
jax: 0.10.0
libtpu: 0.0.40
codegen_flags: <defaults>
</compile_context>

<pallas_src>
import jax
import jax.numpy as jnp
from jax.experimental import pallas as pl
from jax.experimental.pallas import tpu as pltpu

_REDUCTION_MODES = ("none", "mean", "sum")

_LANE = 512                      # lane width (multiple of 128 -> wide unmasked vld/vst)
_MAX_ROWS = 2048                 # hard cap on sublane rows per block
_VMEM_BUDGET = 12 * 1024 * 1024  # double-buffered pipeline budget (< v5e 16 MiB default)


def _round_up(x, m):
    return (x + m - 1) // m * m


def _cdiv(a, b):
    return (a + b - 1) // b


def _row_block(nrows, n_big_refs, itemsize):
    """Pick a sublane row-block size.

    * large inputs: biggest block keeping n_big_refs double-buffered refs
      under the VMEM budget (fits v5e's 16 MiB scoped default everywhere).
    * medium inputs: split into >= 2 blocks so both v7x TensorCores get work.
    * tiny inputs: one full-extent block (exempt from the (8/16,128) rule).
    """
    per_ref = _VMEM_BUDGET // (2 * n_big_refs)
    br = per_ref // (_LANE * itemsize)
    br = max(256, min(_MAX_ROWS, (br // 256) * 256))
    if nrows <= 32:
        return nrows
    if nrows <= br:
        # multiple of 16 -> valid sublane tiling for both f32 and bf16 blocks
        return min(br, _round_up(_cdiv(nrows, 2), 16))
    return br


def _as_rows(a, total, padded_total):
    """Flatten in the original dtype (upcast happens in-kernel); zero-pad only
    when numel is not already a multiple of the lane width."""
    flat = a.reshape(-1)
    if padded_total != total:
        flat = jnp.pad(flat, (0, padded_total - total))
    return flat.reshape(padded_total // _LANE, _LANE)


# ----------------------------- kernels --------------------------------------


def _make_none_kernel(weighted, loss_weight):
    """Elementwise squared error; loss_weight and output dtype cast folded in."""

    def kernel(*refs):
        if weighted:
            p_ref, t_ref, w_ref, o_ref = refs
        else:
            p_ref, t_ref, o_ref = refs
        d = p_ref[...].astype(jnp.float32) - t_ref[...].astype(jnp.float32)
        sq = d * d
        if weighted:
            sq = sq * w_ref[...].astype(jnp.float32)
        if loss_weight != 1.0:
            sq = sq * loss_weight
        o_ref[...] = sq.astype(o_ref.dtype)

    return kernel


def _make_sum_kernel(weighted, need_wsum, nrows, br, ragged):
    """Per-block partial sums into tiny SMEM outputs; ragged tail is masked."""

    def kernel(*refs):
        if weighted:
            if need_wsum:
                p_ref, t_ref, w_ref, ls_ref, ws_ref = refs
            else:
                p_ref, t_ref, w_ref, ls_ref = refs
        else:
            p_ref, t_ref, ls_ref = refs

        d = p_ref[...].astype(jnp.float32) - t_ref[...].astype(jnp.float32)
        sq = d * d
        if weighted:
            w = w_ref[...].astype(jnp.float32)
            sq = sq * w
        if ragged:
            # Rows past `nrows` in the last block hold stale VMEM data and
            # must not contribute to the partial sums.
            row = (jax.lax.broadcasted_iota(jnp.int32, sq.shape, 0)
                   + pl.program_id(0) * br)
            valid = row < nrows
            sq = jnp.where(valid, sq, 0.0)
            if weighted and need_wsum:
                w = jnp.where(valid, w, 0.0)
        ls_ref[0, 0] = jnp.sum(sq)
        if weighted and need_wsum:
            ws_ref[0, 0] = jnp.sum(w)

    return kernel


# ----------------------------- wrapper ---------------------------------------


def mse_loss(pred, target, weight=None, reduction="mean", loss_weight=1.0):
    if reduction not in _REDUCTION_MODES:
        raise ValueError(
            f"Unsupported reduction mode: {reduction}. "
            f"Supported ones are: {list(_REDUCTION_MODES)}")
    assert pred.shape == target.shape
    if weight is not None:
        # TODO(synk): basicsr also supports a broadcast single-channel weight
        # (weight.size(1) == 1 with *C mean-normalization); only same-shape
        # weights are handled here.
        assert weight.shape == pred.shape

    orig_shape = pred.shape
    orig_dtype = pred.dtype
    total = int(pred.size)
    weighted = weight is not None

    rows = _round_up(total, _LANE) // _LANE
    padded_total = rows * _LANE

    itemsizes = [jnp.dtype(pred.dtype).itemsize, jnp.dtype(target.dtype).itemsize]
    if weighted:
        itemsizes.append(jnp.dtype(weight.dtype).itemsize)
    if reduction == "none":
        itemsizes.append(jnp.dtype(orig_dtype).itemsize)
        n_big_refs = 4 if weighted else 3
    else:
        n_big_refs = 3 if weighted else 2

    br = _row_block(rows, n_big_refs, max(itemsizes))
    grid = _cdiv(rows, br)
    ragged = (rows % br) != 0

    p2 = _as_rows(pred, total, padded_total)
    t2 = _as_rows(target, total, padded_total)
    inputs = [p2, t2]
    if weighted:
        inputs.append(_as_rows(weight, total, padded_total))
    in_bytes = sum(int(x.size) * jnp.dtype(x.dtype).itemsize for x in inputs)

    in_spec = pl.BlockSpec((br, _LANE), lambda i: (i, 0))
    scalar_out_spec = pl.BlockSpec((1, 1), lambda i: (i, 0),
                                   memory_space=pltpu.SMEM)
    cparams = pltpu.CompilerParams(dimension_semantics=("parallel",))

    if reduction == "none":
        out_bytes = padded_total * jnp.dtype(orig_dtype).itemsize
        out = pl.pallas_call(
            _make_none_kernel(weighted, float(loss_weight)),
            out_shape=jax.ShapeDtypeStruct((rows, _LANE), orig_dtype),
            grid_spec=pltpu.PrefetchScalarGridSpec(
                num_scalar_prefetch=0,
                grid=(grid,),
                in_specs=[in_spec] * len(inputs),
                out_specs=pl.BlockSpec((br, _LANE), lambda i: (i, 0)),
            ),
            compiler_params=cparams,
            cost_estimate=pl.CostEstimate(
                flops=(4 if weighted else 3) * padded_total,
                transcendentals=0,
                bytes_accessed=in_bytes + out_bytes),
        )(*inputs)
        # loss_weight and the dtype cast were applied inside the kernel.
        return out.reshape(-1)[:total].reshape(orig_shape)

    # 'mean' / 'sum': per-block partial sums -> tiny SMEM outputs, finish in JAX.
    need_wsum = weighted and reduction == "mean"
    n_outs = 2 if need_wsum else 1
    kern = _make_sum_kernel(weighted, need_wsum, rows, br, ragged)
    out_shapes = tuple(jax.ShapeDtypeStruct((grid, 1), jnp.float32)
                       for _ in range(n_outs))
    out_specs = tuple(scalar_out_spec for _ in range(n_outs))
    if n_outs == 1:
        out_shapes = out_shapes[0]
        out_specs = out_specs[0]

    partials = pl.pallas_call(
        kern,
        out_shape=out_shapes,
        grid_spec=pltpu.PrefetchScalarGridSpec(
            num_scalar_prefetch=0,
            grid=(grid,),
            in_specs=[in_spec] * len(inputs),
            out_specs=out_specs,
        ),
        compiler_params=cparams,
        cost_estimate=pl.CostEstimate(
            flops=(5 if weighted else 3) * padded_total,
            transcendentals=0,
            bytes_accessed=in_bytes + 4 * grid * n_outs),
    )(*inputs)

    if need_wsum:
        loss_part, w_part = partials
    else:
        loss_part = partials

    loss_sum = jnp.sum(loss_part)
    if reduction == "sum":
        return loss_weight * loss_sum
    if weighted:
        # Weighted 'mean': normalize by sum of element-wise weights.
        # TODO(synk): basicsr/torch apply no epsilon here; all-zero weights give inf/nan.
        return loss_weight * (loss_sum / jnp.sum(w_part))
    return loss_weight * (loss_sum / total)   # mean over numel


class MSELoss:
    """MSE (L2) loss, matching the PyTorch module's forward semantics."""

    def __init__(self, loss_weight=1.0, reduction="mean"):
        if reduction not in _REDUCTION_MODES:
            raise ValueError(
                f"Unsupported reduction mode: {reduction}. "
                f"Supported ones are: {list(_REDUCTION_MODES)}")
        self.loss_weight = loss_weight
        self.reduction = reduction

    def __call__(self, pred, target, weight=None, **kwargs):
        return mse_loss(pred, target, weight=weight,
                        reduction=self.reduction,
                        loss_weight=self.loss_weight)


if __name__ == "__main__":
    key = jax.random.PRNGKey(0)
    kp, kt, kw = jax.random.split(key, 3)

    # Lane-aligned shape (numel = 2048 = 4 x 512) -> zero-copy in/out path.
    shape = (2, 4, 16, 16)
    pred = jax.random.normal(kp, shape, dtype=jnp.float32)
    target = jax.random.normal(kt, shape, dtype=jnp.float32)
    weight = jax.random.uniform(kw, shape, dtype=jnp.float32)

    sq = (pred - target) ** 2  # pure-JAX reference

    # default path: reduction='mean', weight=None
    out_mean = MSELoss(loss_weight=1.0, reduction="mean")(pred, target)
    jax.block_until_ready(out_mean)
    assert jnp.allclose(out_mean, jnp.mean(sq), atol=1e-5, rtol=1e-5)

    # 'sum'
    out_sum = MSELoss(reduction="sum")(pred, target)
    jax.block_until_ready(out_sum)
    assert jnp.allclose(out_sum, jnp.sum(sq), atol=1e-3, rtol=1e-5)

    # 'none' with a non-trivial loss_weight (folded into the kernel)
    out_none = MSELoss(loss_weight=0.5, reduction="none")(pred, target)
    jax.block_until_ready(out_none)
    assert out_none.shape == shape and out_none.dtype == pred.dtype
    assert jnp.allclose(out_none, 0.5 * sq, atol=1e-5, rtol=1e-5)

    # weighted 'mean' (normalized by weight.sum())
    out_wmean = MSELoss(reduction="mean")(pred, target, weight=weight)
    jax.block_until_ready(out_wmean)
    assert jnp.allclose(out_wmean, jnp.sum(sq * weight) / jnp.sum(weight),
                        atol=1e-5, rtol=1e-5)

    # weighted 'sum' (skips the weight-sum output)
    out_wsum = MSELoss(reduction="sum")(pred, target, weight=weight)
    jax.block_until_ready(out_wsum)
    assert jnp.allclose(out_wsum, jnp.sum(sq * weight), atol=1e-3, rtol=1e-4)

    # Ragged shape: numel not a multiple of 512 AND rows not a multiple of the
    # block -> exercises lane padding + the in-kernel tail mask with grid >= 2.
    shape_r = (2, 3, 33, 100)   # 19800 elems -> 39 rows, block 32, grid 2
    kp2, kt2 = jax.random.split(kp)
    pred_r = jax.random.normal(kp2, shape_r, dtype=jnp.float32)
    target_r = jax.random.normal(kt2, shape_r, dtype=jnp.float32)
    sq_r = (pred_r - target_r) ** 2
    out_rmean = MSELoss(reduction="mean")(pred_r, target_r)
    out_rnone = MSELoss(reduction="none")(pred_r, target_r)
    jax.block_until_ready((out_rmean, out_rnone))
    assert jnp.allclose(out_rmean, jnp.mean(sq_r), atol=1e-5, rtol=1e-5)
    assert out_rnone.shape == shape_r
    assert jnp.allclose(out_rnone, sq_r, atol=1e-5, rtol=1e-5)

    # bf16 inputs: kept bf16 in HBM, upcast in-register, 'none' stores bf16.
    pred_b = pred.astype(jnp.bfloat16)
    target_b = target.astype(jnp.bfloat16)
    sq_b = (pred_b.astype(jnp.float32) - target_b.astype(jnp.float32)) ** 2
    out_bmean = MSELoss(reduction="mean")(pred_b, target_b)
    out_bnone = MSELoss(reduction="none")(pred_b, target_b)
    jax.block_until_ready((out_bmean, out_bnone))
    assert out_bnone.dtype == jnp.bfloat16
    assert jnp.allclose(out_bmean, jnp.mean(sq_b), atol=1e-3, rtol=1e-3)
    assert jnp.allclose(out_bnone.astype(jnp.float32), sq_b, atol=3e-2, rtol=3e-2)

    print("KERNEL_OK")
</pallas_src>

<mosaic_0001>
module attributes {stable_mosaic.version = 11 : i64} {
  func.func @kernel(%arg0: i32, %arg1: memref<4x512xf32, #tpu.memory_space<vmem>>, %arg2: memref<4x512xf32, #tpu.memory_space<vmem>>, %arg3: memref<1x1xf32, #tpu.memory_space<smem>>) attributes {dimension_semantics = [#tpu.dimension_semantics<parallel>], iteration_bounds = array<i64: 1>, scalar_prefetch = 0 : i64, scratch_operands = 0 : i64, tpu.core_type = #tpu.core_type<tc>, window_params = [{transform_indices = @transform_0, window_bounds = array<i64: 4, 512>}, {transform_indices = @transform_1, window_bounds = array<i64: 4, 512>}, {transform_indices = @transform_2, window_bounds = array<i64: 1, 1>}]} {
    %c0 = arith.constant 0 : index
    %c0_0 = arith.constant 0 : index
    %0 = vector.load %arg1[%c0, %c0_0] : memref<4x512xf32, #tpu.memory_space<vmem>>, vector<4x512xf32>
    %c0_1 = arith.constant 0 : index
    %c0_2 = arith.constant 0 : index
    %1 = vector.load %arg2[%c0_1, %c0_2] : memref<4x512xf32, #tpu.memory_space<vmem>>, vector<4x512xf32>
    %2 = arith.subf %0, %1 : vector<4x512xf32>
    %3 = arith.mulf %2, %2 : vector<4x512xf32>
    %4 = vector.shape_cast %3 : vector<4x512xf32> to vector<1x4x512xf32>
    %cst = arith.constant dense<0.000000e+00> : vector<1xf32>
    %5 = vector.multi_reduction <add>, %4, %cst [1, 2] : vector<1x4x512xf32> to vector<1xf32>
    %6 = vector.shape_cast %5 : vector<1xf32> to vector<1x1x1xf32>
    %7 = vector.extract %6[0, 0, 0] : f32 from vector<1x1x1xf32>
    %c0_3 = arith.constant 0 : index
    %c0_4 = arith.constant 0 : index
    %8 = memref.load %arg3[%c0_3, %c0_4] : memref<1x1xf32, #tpu.memory_space<smem>>
    memref.store %7, %arg3[%c0_3, %c0_4] : memref<1x1xf32, #tpu.memory_space<smem>>
    return
  }
  func.func @transform_0(%arg0: i32) -> (i32, i32) {
    %c0_i32 = arith.constant 0 : i32
    %c0_i32_0 = arith.constant 0 : i32
    return %arg0, %c0_i32 : i32, i32
  }
  func.func @transform_1(%arg0: i32) -> (i32, i32) {
    %c0_i32 = arith.constant 0 : i32
    %c0_i32_0 = arith.constant 0 : i32
    return %arg0, %c0_i32 : i32, i32
  }
  func.func @transform_2(%arg0: i32) -> (i32, i32) {
    %c0_i32 = arith.constant 0 : i32
    %c0_i32_0 = arith.constant 0 : i32
    return %arg0, %c0_i32 : i32, i32
  }
}

</mosaic_0001>

<llo_original>
// kernel: tpu_custom_call.1
$region0: #{tpu_custom_call.1}
  #allocation0 [shape = 'u32[]', space=smem, size = 0x4, offset = 0x4, fixed_abs, tag = 'smem constant byte address 0x4 - core index']
  #allocation1 [shape = 'u32[144,128]{1,0:T(1,128)}', space=vmem, size = 0x12000, scoped, tag = 'internal scratch']
  %s0 = inlined_call_operand.hbm [shape: f32[4,512], index: 0, kind: input, shape index: {}]
  %s1 = inlined_call_operand.hbm [shape: f32[4,512], index: 1, kind: input, shape index: {}]
  %s2 = inlined_call_operand.hbm [shape: f32[1,1], index: 2, kind: output, shape index: {}]
  %s3 = sld [smem:[#allocation0]]
  $region26: #{tpu_custom_call.1} parent=0
    _
  %s5 = ssub.s32 1, %s3
  %s6 = scalar_select 0, %s5, %s3
  $region1: #{tpu_custom_call.1} parent=0
    #allocation2 [shape = 'u8[8192]{0}', space=vmem, size = 0x2000, scoped, tag = 'input window, operand 0, single buffered']
    #allocation3 [shape = 's32[1]{0}', space=sflag, size = 0x4, scoped, tag = 'scoped memory for tpu_custom_call.1']
    #allocation4 [shape = 's32[1]{0}', space=sflag, size = 0x4, scoped, tag = 'scoped memory for tpu_custom_call.1']
    #allocation5 [shape = 'u8[8192]{0}', space=vmem, size = 0x2000, scoped, tag = 'input window, operand 1, single buffered']
    #allocation6 [shape = 's32[1]{0}', space=sflag, size = 0x4, scoped, tag = 'scoped memory for tpu_custom_call.1']
    #allocation7 [shape = 'u8[512]{0}', space=smem, size = 0x200, scoped, tag = 'output window, operand 0, single buffered']
    %7 = vsyncpa [#allocation3], 0
    %8 = vsyncpa [#allocation6], 0
    %9 = vsyncpa [#allocation4], 0
    // Predicated region
    $region2: #{tpu_custom_call.1} parent=1 // pred_check
      _
    $region3: #{tpu_custom_call.1} parent=1 // pred_check_branch
      %11 = sbr.rel (0) target = $region5
    $region4: #{tpu_custom_call.1} parent=1 // pred_region
      %s13 = ssub.s32 256, 256
      %14 = vsyncadd [#allocation3], %s13
      %s16 = sshll.u32 [#allocation2], 4
      %s17 = int_to_ptr.vmem [resolvable:$true] %s16
      %19 = dma.hbm_to_vmem [thread:$0]  %s0, 256, %s17, [#allocation3]
    $region5: #{tpu_custom_call.1} parent=1 // pred_fallthru
      _
    // Predicated region
    $region6: #{tpu_custom_call.1} parent=1 // pred_check
      _
    $region7: #{tpu_custom_call.1} parent=1 // pred_check_branch
      %21 = sbr.rel (0) target = $region9
    $region8: #{tpu_custom_call.1} parent=1 // pred_region
      %s23 = ssub.s32 256, 256
      %24 = vsyncadd [#allocation6], %s23
      %s26 = sshll.u32 [#allocation5], 4
      %s27 = int_to_ptr.vmem [resolvable:$true] %s26
      %29 = dma.hbm_to_vmem [thread:$0]  %s1, 256, %s27, [#allocation6]
    $region9: #{tpu_custom_call.1} parent=1 // pred_fallthru
      _
    // Predicated region
    $region10: #{tpu_custom_call.1} parent=1 // pred_check
      _
    $region11: #{tpu_custom_call.1} parent=1 // pred_check_branch
      %31 = sbr.rel (0) target = $region13
    $region12: #{tpu_custom_call.1} parent=1 // pred_region
      %32 = dma.done [#allocation3], 256
    $region13: #{tpu_custom_call.1} parent=1 // pred_fallthru
      _
    // Predicated region
    $region14: #{tpu_custom_call.1} parent=1 // pred_check
      _
    $region15: #{tpu_custom_call.1} parent=1 // pred_check_branch
      %34 = sbr.rel (0) target = $region17
    $region16: #{tpu_custom_call.1} parent=1 // pred_region
      %35 = dma.done [#allocation6], 256
    $region17: #{tpu_custom_call.1} parent=1 // pred_fallthru
      _
    %v36 = vld [vmem:[#allocation2] sm:$0xff]
    %v37 = vld [vmem:[#allocation2 + $0x8] sm:$0xff]
    %v38 = vld [vmem:[#allocation5] sm:$0xff]
    %v39 = vld [vmem:[#allocation5 + $0x8] sm:$0xff]
    %v40 = vsub.f32 %v36, %v38
    %v41 = vsub.f32 %v37, %v39
    %v42 = vmul.f32 %v40, %v40
    %v43 = vmul.f32 %v41, %v41
    %v46 = vcombine.high %v42, %v42
    %v47 = vcombine.high %v43, %v43
    %vm50 = vcmask 1043456
    %v51 = vsel %vm50, %v42, 0.0
    %v52 = vsel %vm50, %v46, 0.0
    %v53 = vadd.f32 %v51, %v52
    %v54 = vsel %vm50, %v43, 0.0
    %v55 = vadd.f32 %v53, %v54
    %v56 = vsel %vm50, %v47, 0.0
    %v57 = vadd.f32 %v55, %v56
    %58 = vadd.xlane.f32.xlu0 %v57
    %v59 = vpop.xlane.xlu0 %58
    %v60 = vrot.slane %v59, 4
    %v61 = vadd.f32 %v59, %v60
    %v62 = vrot.slane %v61, 2
    %v63 = vadd.f32 %v61, %v62
    %v64 = vrot.slane %v63, 1
    %v65 = vadd.f32 %v63, %v64
    %s66 = vtos %v65
    %s67 = scalar_lea.smem [#allocation7], 0
    %68 = sst [smem:[%s67]] %s66
    // Predicated region
    $region18: #{tpu_custom_call.1} parent=1 // pred_check
      _
    $region19: #{tpu_custom_call.1} parent=1 // pred_check_branch
      %70 = sbr.rel (0) target = $region21
    $region20: #{tpu_custom_call.1} parent=1 // pred_region
      %s72 = ssub.s32 16, 16
      %73 = vsyncadd [#allocation4], %s72
      %76 = dma.smem_to_hbm [#allocation7], 16, %s2, [#allocation4]
    $region21: #{tpu_custom_call.1} parent=1 // pred_fallthru
      _
    // Predicated region
    $region22: #{tpu_custom_call.1} parent=1 // pred_check
      _
    $region23: #{tpu_custom_call.1} parent=1 // pred_check_branch
      %78 = sbr.rel (0) target = $region25
    $region24: #{tpu_custom_call.1} parent=1 // pred_region
      %79 = dma.done [#allocation4], 16
    $region25: #{tpu_custom_call.1} parent=1 // pred_fallthru
      _
    %80 = sfence
    %81 = vsyncpa [#allocation3], 1
    %82 = vsyncpa [#allocation6], 1
    %83 = vsyncpa [#allocation4], 1

</llo_original>
